<compile_context>
chip_gen: v7x
topology: tpu7x:2x2x1
jax: 0.10.0
libtpu: 0.0.40
codegen_flags: <defaults>
</compile_context>

<pallas_src>
import functools

import jax
import jax.numpy as jnp
from jax.experimental import pallas as pl
from jax.experimental.pallas import tpu as pltpu

HIDDEN = 30  # matches nn.Linear(in_size, 30) / nn.Linear(30, 30)


def _net2_kernel(x_ref, w1_ref, b1_ref, w2_ref, b2_ref, w3_ref, b3_ref, o_ref):
    # x_ref : (in_size, TB)            batch on lanes
    # w1_ref: (30, in_size)  b1_ref: (30, 1)
    # w2_ref: (30, 30)       b2_ref: (30, 1)
    # w3_ref: (out, 30)      b3_ref: (out, 1)
    # o_ref : (out, TB)
    x = x_ref[...]

    h = jnp.dot(w1_ref[...], x, preferred_element_type=jnp.float32) + b1_ref[...]
    h = jnp.maximum(h, 0.0)

    h = jnp.dot(w2_ref[...], h, preferred_element_type=jnp.float32) + b2_ref[...]
    h = jnp.maximum(h, 0.0)

    y = jnp.dot(w3_ref[...], h, preferred_element_type=jnp.float32) + b3_ref[...]
    o_ref[...] = y.astype(o_ref.dtype)


def prepare_params(torch_layout_params):
    """One-time conversion of PyTorch-layout params for the kernel.

    Weights stay in PyTorch (out, in) layout (the kernel computes W @ x, so no
    transpose is ever needed); biases become (out, 1) column vectors so they
    broadcast across the lane (batch) axis.
    """
    p = torch_layout_params
    return {
        "w1": jnp.asarray(p["w1"], jnp.float32),
        "w2": jnp.asarray(p["w2"], jnp.float32),
        "w3": jnp.asarray(p["w3"], jnp.float32),
        "b1": jnp.asarray(p["b1"], jnp.float32).reshape(-1, 1),
        "b2": jnp.asarray(p["b2"], jnp.float32).reshape(-1, 1),
        "b3": jnp.asarray(p["b3"], jnp.float32).reshape(-1, 1),
    }


@functools.partial(jax.jit, static_argnames=("batch_tile",))
def net2_forward(x, kparams, *, batch_tile=2048):
    """Forward pass matching the PyTorch module.

    x: (B, in_size) float32.  kparams: output of prepare_params().
    Returns (B, out_size) float32.
    """
    B, in_size = x.shape
    w1, w2, w3 = kparams["w1"], kparams["w2"], kparams["w3"]
    b1, b2, b3 = kparams["b1"], kparams["b2"], kparams["b3"]
    out_size = w3.shape[0]

    # Batch tile: multiple of 128 lanes, no bigger than needed for this batch.
    assert batch_tile % 128 == 0, "batch_tile must be a multiple of 128"
    tb = min(batch_tile, pl.cdiv(B, 128) * 128)
    padded_b = pl.cdiv(B, tb) * tb
    n_tiles = padded_b // tb

    # Lane-dense layout: features on sublanes, batch on lanes.  Single fused
    # transpose+pad (zero padding in the lane/batch direction).
    x_t = jnp.pad(x.T, ((0, 0), (0, padded_b - B)))

    # Constant index_map => weights/biases stay resident in VMEM across steps.
    resident = lambda a: pl.BlockSpec(a.shape, lambda i: (0, 0))

    flops = 2 * B * (in_size * HIDDEN + HIDDEN * HIDDEN + HIDDEN * out_size)
    param_elems = w1.size + w2.size + w3.size + b1.size + b2.size + b3.size
    bytes_accessed = 4 * (B * in_size + B * out_size + param_elems)
    cost = pl.CostEstimate(
        flops=flops, transcendentals=0, bytes_accessed=bytes_accessed
    )

    out_t = pl.pallas_call(
        _net2_kernel,
        out_shape=jax.ShapeDtypeStruct((out_size, padded_b), jnp.float32),
        grid_spec=pltpu.PrefetchScalarGridSpec(
            num_scalar_prefetch=0,
            grid=(n_tiles,),
            in_specs=[
                pl.BlockSpec((in_size, tb), lambda i: (0, i)),  # x tile
                resident(w1), resident(b1),
                resident(w2), resident(b2),
                resident(w3), resident(b3),
            ],
            out_specs=pl.BlockSpec((out_size, tb), lambda i: (0, i)),
        ),
        compiler_params=pltpu.CompilerParams(
            dimension_semantics=("parallel",),      # shard batch tiles on v7x
            vmem_limit_bytes=32 * 1024 * 1024,      # safe on v5e/v6e/v7x
        ),
        cost_estimate=cost,
    )(x_t, w1, b1, w2, b2, w3, b3)

    # Back to the PyTorch (B, out_size) convention, dropping batch padding.
    return out_t[:, :B].T


def init_params(key, in_size, out_size):
    """Deterministic PyTorch-Linear-style uniform(-1/sqrt(fan_in)) init."""
    ks = jax.random.split(key, 6)

    def lin(kw, kb, fan_in, fan_out):
        bound = 1.0 / jnp.sqrt(jnp.float32(fan_in))
        w = jax.random.uniform(kw, (fan_out, fan_in), jnp.float32, -bound, bound)
        b = jax.random.uniform(kb, (fan_out,), jnp.float32, -bound, bound)
        return w, b

    w1, b1 = lin(ks[0], ks[1], in_size, HIDDEN)
    w2, b2 = lin(ks[2], ks[3], HIDDEN, HIDDEN)
    w3, b3 = lin(ks[4], ks[5], HIDDEN, out_size)
    return {"w1": w1, "b1": b1, "w2": w2, "b2": b2, "w3": w3, "b3": b3}


def net2_reference(x, params):
    """Pure-JAX reference matching the PyTorch forward (PyTorch layout)."""
    h = jnp.maximum(x @ params["w1"].T + params["b1"], 0.0)
    h = jnp.maximum(h @ params["w2"].T + params["b2"], 0.0)
    return h @ params["w3"].T + params["b3"]


if __name__ == "__main__":
    # Small shapes consistent with the module (FEM sample points:
    # in_size=4 coordinates/features, out_size=3 outputs).
    in_size, out_size = 4, 3

    key = jax.random.PRNGKey(0)
    kx, kx2, kp = jax.random.split(key, 3)
    params = init_params(kp, in_size, out_size)
    kparams = prepare_params(params)  # one-time layout prep (no per-call transposes)

    # Test 1: small batch, single tile.
    x = jax.random.normal(kx, (16, in_size), dtype=jnp.float32)
    out = jax.block_until_ready(net2_forward(x, kparams))
    ref = net2_reference(x, params)
    assert out.shape == (16, out_size)
    assert jnp.allclose(out, ref, atol=1e-5, rtol=1e-5), "mismatch vs reference (B=16)"

    # Test 2: batch not a multiple of the tile -> exercises grid + padding path.
    x2 = jax.random.normal(kx2, (300, in_size), dtype=jnp.float32)
    out2 = jax.block_until_ready(net2_forward(x2, kparams, batch_tile=128))
    ref2 = net2_reference(x2, params)
    assert out2.shape == (300, out_size)
    assert jnp.allclose(out2, ref2, atol=1e-5, rtol=1e-5), "mismatch vs reference (B=300)"

    print("KERNEL_OK")
</pallas_src>

<mosaic_0001>
module attributes {stable_mosaic.version = 11 : i64} {
  func.func @_net2_kernel(%arg0: i32, %arg1: memref<4x128xf32, #tpu.memory_space<vmem>>, %arg2: memref<30x4xf32, #tpu.memory_space<vmem>>, %arg3: memref<30x1xf32, #tpu.memory_space<vmem>>, %arg4: memref<30x30xf32, #tpu.memory_space<vmem>>, %arg5: memref<30x1xf32, #tpu.memory_space<vmem>>, %arg6: memref<3x30xf32, #tpu.memory_space<vmem>>, %arg7: memref<3x1xf32, #tpu.memory_space<vmem>>, %arg8: memref<3x128xf32, #tpu.memory_space<vmem>>) attributes {dimension_semantics = [#tpu.dimension_semantics<parallel>], iteration_bounds = array<i64: 1>, scalar_prefetch = 0 : i64, scratch_operands = 0 : i64, tpu.core_type = #tpu.core_type<tc>, window_params = [{transform_indices = @transform_0, window_bounds = array<i64: 4, 128>}, {pipeline_mode = #tpu.pipeline_mode<synchronous>, transform_indices = @transform_1, window_bounds = array<i64: 30, 4>}, {pipeline_mode = #tpu.pipeline_mode<synchronous>, transform_indices = @transform_2, window_bounds = array<i64: 30, 1>}, {pipeline_mode = #tpu.pipeline_mode<synchronous>, transform_indices = @transform_3, window_bounds = array<i64: 30, 30>}, {pipeline_mode = #tpu.pipeline_mode<synchronous>, transform_indices = @transform_4, window_bounds = array<i64: 30, 1>}, {pipeline_mode = #tpu.pipeline_mode<synchronous>, transform_indices = @transform_5, window_bounds = array<i64: 3, 30>}, {pipeline_mode = #tpu.pipeline_mode<synchronous>, transform_indices = @transform_6, window_bounds = array<i64: 3, 1>}, {transform_indices = @transform_7, window_bounds = array<i64: 3, 128>}]} {
    %c0 = arith.constant 0 : index
    %c0_0 = arith.constant 0 : index
    %0 = vector.load %arg1[%c0, %c0_0] : memref<4x128xf32, #tpu.memory_space<vmem>>, vector<4x128xf32>
    %c0_1 = arith.constant 0 : index
    %c0_2 = arith.constant 0 : index
    %1 = vector.load %arg2[%c0_1, %c0_2] : memref<30x4xf32, #tpu.memory_space<vmem>>, vector<30x4xf32>
    %cst = arith.constant dense<0.000000e+00> : vector<30x128xf32>
    %2 = tpu.matmul %1, %0, %cst {dimension_numbers = #tpu.dot_dimension_numbers<[1], [0], [0], [1], [0, 0, 1, 1], [], []>} : vector<30x4xf32>, vector<4x128xf32>, vector<30x128xf32> -> vector<30x128xf32>
    %c0_3 = arith.constant 0 : index
    %c0_4 = arith.constant 0 : index
    %3 = vector.load %arg3[%c0_3, %c0_4] : memref<30x1xf32, #tpu.memory_space<vmem>>, vector<30x1xf32>
    %4 = vector.broadcast %3 : vector<30x1xf32> to vector<30x128xf32>
    %5 = arith.addf %2, %4 : vector<30x128xf32>
    %cst_5 = arith.constant 0.000000e+00 : f32
    %6 = vector.broadcast %cst_5 : f32 to vector<30x128xf32>
    %7 = arith.maximumf %5, %6 : vector<30x128xf32>
    %c0_6 = arith.constant 0 : index
    %c0_7 = arith.constant 0 : index
    %8 = vector.load %arg4[%c0_6, %c0_7] : memref<30x30xf32, #tpu.memory_space<vmem>>, vector<30x30xf32>
    %cst_8 = arith.constant dense<0.000000e+00> : vector<30x128xf32>
    %9 = tpu.matmul %8, %7, %cst_8 {dimension_numbers = #tpu.dot_dimension_numbers<[1], [0], [0], [1], [0, 0, 1, 1], [], []>} : vector<30x30xf32>, vector<30x128xf32>, vector<30x128xf32> -> vector<30x128xf32>
    %c0_9 = arith.constant 0 : index
    %c0_10 = arith.constant 0 : index
    %10 = vector.load %arg5[%c0_9, %c0_10] : memref<30x1xf32, #tpu.memory_space<vmem>>, vector<30x1xf32>
    %11 = vector.broadcast %10 : vector<30x1xf32> to vector<30x128xf32>
    %12 = arith.addf %9, %11 : vector<30x128xf32>
    %cst_11 = arith.constant 0.000000e+00 : f32
    %13 = vector.broadcast %cst_11 : f32 to vector<30x128xf32>
    %14 = arith.maximumf %12, %13 : vector<30x128xf32>
    %c0_12 = arith.constant 0 : index
    %c0_13 = arith.constant 0 : index
    %15 = vector.load %arg6[%c0_12, %c0_13] : memref<3x30xf32, #tpu.memory_space<vmem>>, vector<3x30xf32>
    %cst_14 = arith.constant dense<0.000000e+00> : vector<3x128xf32>
    %16 = tpu.matmul %15, %14, %cst_14 {dimension_numbers = #tpu.dot_dimension_numbers<[1], [0], [0], [1], [0, 0, 1, 1], [], []>} : vector<3x30xf32>, vector<30x128xf32>, vector<3x128xf32> -> vector<3x128xf32>
    %c0_15 = arith.constant 0 : index
    %c0_16 = arith.constant 0 : index
    %17 = vector.load %arg7[%c0_15, %c0_16] : memref<3x1xf32, #tpu.memory_space<vmem>>, vector<3x1xf32>
    %18 = vector.broadcast %17 : vector<3x1xf32> to vector<3x128xf32>
    %19 = arith.addf %16, %18 : vector<3x128xf32>
    %c0_17 = arith.constant 0 : index
    %c0_18 = arith.constant 0 : index
    %20 = vector.load %arg8[%c0_17, %c0_18] : memref<3x128xf32, #tpu.memory_space<vmem>>, vector<3x128xf32>
    tpu.vector_store %arg8[%c0_17, %c0_18], %19 {strides = array<i32>} : memref<3x128xf32, #tpu.memory_space<vmem>>, vector<3x128xf32>,
    return
  }
  func.func @transform_0(%arg0: i32) -> (i32, i32) {
    %c0_i32 = arith.constant 0 : i32
    %c0_i32_0 = arith.constant 0 : i32
    return %c0_i32, %arg0 : i32, i32
  }
  func.func @transform_1(%arg0: i32) -> (i32, i32) {
    %c0_i32 = arith.constant 0 : i32
    %c0_i32_0 = arith.constant 0 : i32
    %c0_i32_1 = arith.constant 0 : i32
    return %c0_i32, %c0_i32_0 : i32, i32
  }
  func.func @transform_2(%arg0: i32) -> (i32, i32) {
    %c0_i32 = arith.constant 0 : i32
    %c0_i32_0 = arith.constant 0 : i32
    %c0_i32_1 = arith.constant 0 : i32
    return %c0_i32, %c0_i32_0 : i32, i32
  }
  func.func @transform_3(%arg0: i32) -> (i32, i32) {
    %c0_i32 = arith.constant 0 : i32
    %c0_i32_0 = arith.constant 0 : i32
    %c0_i32_1 = arith.constant 0 : i32
    return %c0_i32, %c0_i32_0 : i32, i32
  }
  func.func @transform_4(%arg0: i32) -> (i32, i32) {
    %c0_i32 = arith.constant 0 : i32
    %c0_i32_0 = arith.constant 0 : i32
    %c0_i32_1 = arith.constant 0 : i32
    return %c0_i32, %c0_i32_0 : i32, i32
  }
  func.func @transform_5(%arg0: i32) -> (i32, i32) {
    %c0_i32 = arith.constant 0 : i32
    %c0_i32_0 = arith.constant 0 : i32
    %c0_i32_1 = arith.constant 0 : i32
    return %c0_i32, %c0_i32_0 : i32, i32
  }
  func.func @transform_6(%arg0: i32) -> (i32, i32) {
    %c0_i32 = arith.constant 0 : i32
    %c0_i32_0 = arith.constant 0 : i32
    %c0_i32_1 = arith.constant 0 : i32
    return %c0_i32, %c0_i32_0 : i32, i32
  }
  func.func @transform_7(%arg0: i32) -> (i32, i32) {
    %c0_i32 = arith.constant 0 : i32
    %c0_i32_0 = arith.constant 0 : i32
    return %c0_i32, %arg0 : i32, i32
  }
}

</mosaic_0001>

<llo_original>
// kernel: net2_forward.1
$region0: #{net2_forward.1}
  #allocation0 [shape = 'u32[]', space=smem, size = 0x4, offset = 0x4, fixed_abs, tag = 'smem constant byte address 0x4 - core index']
  #allocation1 [shape = 'u32[144,128]{1,0:T(1,128)}', space=vmem, size = 0x12000, scoped, tag = 'internal scratch']
  %s0 = inlined_call_operand.vmem [shape: f32[4,128], index: 0, kind: input, shape index: {}]
  %s1 = inlined_call_operand.vmem [shape: f32[30,4], index: 1, kind: input, shape index: {}]
  %s2 = inlined_call_operand.vmem [shape: f32[30,1], index: 2, kind: input, shape index: {}]
  %s3 = inlined_call_operand.vmem [shape: f32[30,30], index: 3, kind: input, shape index: {}]
  %s4 = inlined_call_operand.vmem [shape: f32[30,1], index: 4, kind: input, shape index: {}]
  %s5 = inlined_call_operand.vmem [shape: f32[3,30], index: 5, kind: input, shape index: {}]
  %s6 = inlined_call_operand.vmem [shape: f32[3,1], index: 6, kind: input, shape index: {}]
  %s7 = inlined_call_operand.vmem [shape: f32[3,128], index: 7, kind: output, shape index: {}]
  %s8 = sld [smem:[#allocation0]]
  $region38: #{net2_forward.1} parent=0
    _
  %s10 = ssub.s32 1, %s8
  %s11 = scalar_select 0, %s10, %s8
  // Predicated region
  $region2: #{net2_forward.1} parent=0 // pred_check
    _
  $region3: #{net2_forward.1} parent=0 // pred_check_branch
    %13 = sbr.rel (0) target = $region5
  $region4: #{net2_forward.1} parent=0 // pred_region
    _
  $region5: #{net2_forward.1} parent=0 // pred_fallthru
    _
  // Predicated region
  $region6: #{net2_forward.1} parent=0 // pred_check
    _
  $region7: #{net2_forward.1} parent=0 // pred_check_branch
    %15 = sbr.rel (0) target = $region9
  $region8: #{net2_forward.1} parent=0 // pred_region
    _
  $region9: #{net2_forward.1} parent=0 // pred_fallthru
    _
  // Predicated region
  $region10: #{net2_forward.1} parent=0 // pred_check
    _
  $region11: #{net2_forward.1} parent=0 // pred_check_branch
    %17 = sbr.rel (0) target = $region13
  $region12: #{net2_forward.1} parent=0 // pred_region
    _
  $region13: #{net2_forward.1} parent=0 // pred_fallthru
    _
  // Predicated region
  $region14: #{net2_forward.1} parent=0 // pred_check
    _
  $region15: #{net2_forward.1} parent=0 // pred_check_branch
    %19 = sbr.rel (0) target = $region17
  $region16: #{net2_forward.1} parent=0 // pred_region
    _
  $region17: #{net2_forward.1} parent=0 // pred_fallthru
    _
  // Predicated region
  $region18: #{net2_forward.1} parent=0 // pred_check
    _
  $region19: #{net2_forward.1} parent=0 // pred_check_branch
    %21 = sbr.rel (0) target = $region21
  $region20: #{net2_forward.1} parent=0 // pred_region
    _
  $region21: #{net2_forward.1} parent=0 // pred_fallthru
    _
  // Predicated region
  $region22: #{net2_forward.1} parent=0 // pred_check
    _
  $region23: #{net2_forward.1} parent=0 // pred_check_branch
    %23 = sbr.rel (0) target = $region25
  $region24: #{net2_forward.1} parent=0 // pred_region
    _
  $region25: #{net2_forward.1} parent=0 // pred_fallthru
    _
  // Predicated region
  $region26: #{net2_forward.1} parent=0 // pred_check
    _
  $region27: #{net2_forward.1} parent=0 // pred_check_branch
    %25 = sbr.rel (0) target = $region29
  $region28: #{net2_forward.1} parent=0 // pred_region
    _
  $region29: #{net2_forward.1} parent=0 // pred_fallthru
    _
  %v26 = vld [vmem:[%s0] sm:$0xf]
  %v27 = vld [vmem:[%s1] sm:$0xff]
  %v28 = vld [vmem:[%s1 + $0x8] sm:$0xff]
  %v29 = vld [vmem:[%s1 + $0x10] sm:$0xff]
  %v30 = vld [vmem:[%s1 + $0x18] sm:$0x3f]
  %v31 = vld [vmem:[%s2] sm:$0xff]
  %v32 = vld [vmem:[%s2 + $0x8] sm:$0xff]
  %v33 = vld [vmem:[%s2 + $0x10] sm:$0xff]
  %v34 = vld [vmem:[%s2 + $0x18] sm:$0x3f]
  %36 = vset.pattern.permute.xlu0 0
  %37 = vperm.xlu0 %36, %v31
  %v38 = vpop.permute.xlu0 %37
  %41 = vset.pattern.permute.xlu0 0
  %42 = vperm.xlu0 %41, %v32
  %v43 = vpop.permute.xlu0 %42
  %46 = vset.pattern.permute.xlu0 0
  %47 = vperm.xlu0 %46, %v33
  %v48 = vpop.permute.xlu0 %47
  %51 = vset.pattern.permute.xlu0 0
  %52 = vperm.xlu0 %51, %v34
  %v53 = vpop.permute.xlu0 %52
  %vm55 = vcmask 31744
  %v57 = vsel %vm55, %v27, 0
  %v60 = vsel %vm55, %v28, 0
  %v63 = vsel %vm55, %v29, 0
  %v66 = vsel %vm55, %v30, 0
  %vm68 = vcmask 1043456
  %v70 = vsel %vm68, %v26, 0
  %72 = vmatprep.subr.mxu0 0.0
  %73 = vmatpush1.msra.mxu0 %v70
  %74 = vmatprep.subr.mxu0 0.0
  %75 = vmatpush1.msra.mxu0 0.0
  %76 = vmatprep.subr.mxu0 0.0
  %77 = vmatpush1.msra.mxu0 0.0
  %78 = vmatprep.subr.mxu0 0.0
  %79 = vmatpush1.msra.mxu0 0.0
  %80 = vmatprep.subr.mxu0 0.0
  %81 = vmatpush1.msra.mxu0 0.0
  %82 = vmatprep.subr.mxu0 0.0
  %83 = vmatpush1.msra.mxu0 0.0
  %84 = vmatprep.subr.mxu0 0.0
  %85 = vmatpush1.msra.mxu0 0.0
  %86 = vmatprep.subr.mxu0 0.0
  %87 = vmatpush1.msra.mxu0 0.0
  %88 = vmatprep.subr.mxu0 0.0
  %89 = vmatpush1.msra.mxu0 0.0
  %90 = vmatprep.subr.mxu0 0.0
  %91 = vmatpush1.msra.mxu0 0.0
  %92 = vmatprep.subr.mxu0 0.0
  %93 = vmatpush1.msra.mxu0 0.0
  %94 = vmatprep.subr.mxu0 0.0
  %95 = vmatpush1.msra.mxu0 0.0
  %96 = vmatprep.subr.mxu0 0.0
  %97 = vmatpush1.msra.mxu0 0.0
  %98 = vmatprep.subr.mxu0 0.0
  %99 = vmatpush1.msra.mxu0 0.0
  %100 = vmatprep.subr.mxu0 0.0
  %101 = vmatpush1.msra.mxu0 0.0
  %102 = vmatprep.subr.mxu0 0.0
  %103 = vmatpush1.msra.mxu0 0.0
  %104 = vmatprep.subr.mxu0 0.0
  %105 = vmatpush1.msra.mxu0 0.0
  %106 = vmatprep.subr.mxu0 0.0
  %107 = vmatpush1.msra.mxu0 0.0
  %108 = vmatprep.subr.mxu0 0.0
  %109 = vmatpush1.msra.mxu0 0.0
  %110 = vmatprep.subr.mxu0 0.0
  %111 = vmatpush1.msra.mxu0 0.0
  %112 = vmatprep.subr.mxu0 0.0
  %113 = vmatpush1.msra.mxu0 0.0
  %114 = vmatprep.subr.mxu0 0.0
  %115 = vmatpush1.msra.mxu0 0.0
  %116 = vmatprep.subr.mxu0 0.0
  %117 = vmatpush1.msra.mxu0 0.0
  %118 = vmatprep.subr.mxu0 0.0
  %119 = vmatpush1.msra.mxu0 0.0
  %120 = vmatprep.subr.mxu0 0.0
  %121 = vmatpush1.msra.mxu0 0.0
  %122 = vmatprep.subr.mxu0 0.0
  %123 = vmatpush1.msra.mxu0 0.0
  %124 = vmatprep.subr.mxu0 0.0
  %125 = vmatpush1.msra.mxu0 0.0
  %126 = vmatprep.subr.mxu0 0.0
  %127 = vmatpush1.msra.mxu0 0.0
  %128 = vmatprep.subr.mxu0 0.0
  %129 = vmatpush1.msra.mxu0 0.0
  %130 = vmatprep.subr.mxu0 0.0
  %131 = vmatpush1.msra.mxu0 0.0
  %132 = vmatprep.subr.mxu0 0.0
  %133 = vmatpush1.msra.mxu0 0.0
  %134 = vmatprep.subr.mxu0 0.0
  %135 = vmatpush1.msra.mxu0 0.0
  %136 = vmatprep.mubr.f32.mxu0 0.0
  %137 = vmatmul.mubr.f32.gmra.mrb[0].mxu0 %v57
  %v138 = vpop.f32.mrb[0].mxu0
  %v139 = vadd.f32 %v38, %v138
  %v140 = vpop.f32.mrb[0].mxu0
  %141 = vmatprep.mubr.f32.mxu0 0.0
  %142 = vmatmul.mubr.f32.gmra.mrb[0].mxu0 %v60
  %v143 = vpop.f32.mrb[0].mxu0
  %v144 = vadd.f32 %v43, %v143
  %v145 = vpop.f32.mrb[0].mxu0
  %146 = vmatprep.mubr.f32.mxu0 0.0
  %147 = vmatmul.mubr.f32.gmra.mrb[0].mxu0 %v63
  %v148 = vpop.f32.mrb[0].mxu0
  %v149 = vadd.f32 %v48, %v148
  %v150 = vpop.f32.mrb[0].mxu0
  %151 = vmatprep.mubr.f32.mxu0 0.0
  %152 = vmatmul.mubr.f32.gmra.mrb[0].mxu0 %v66
  %v153 = vpop.f32.mrb[0].mxu0
  %v154 = vadd.f32 %v53, %v153
  %v155 = vpop.f32.mrb[0].mxu0
  %156 = vdwg.mxu0
  %v157 = vmax.f32 %v139, 0.0
  %v158 = vmax.f32 %v144, 0.0
  %v159 = vmax.f32 %v149, 0.0
  %v160 = vmax.f32 %v154, 0.0
  %v161 = vld [vmem:[%s3] sm:$0xff]
  %v162 = vld [vmem:[%s3 + $0x8] sm:$0xff]
  %v163 = vld [vmem:[%s3 + $0x10] sm:$0xff]
  %v164 = vld [vmem:[%s3 + $0x18] sm:$0x3f]
  %v165 = vld [vmem:[%s4] sm:$0xff]
  %v166 = vld [vmem:[%s4 + $0x8] sm:$0xff]
  %v167 = vld [vmem:[%s4 + $0x10] sm:$0xff]
  %v168 = vld [vmem:[%s4 + $0x18] sm:$0x3f]
  %170 = vset.pattern.permute.xlu0 0
  %171 = vperm.xlu0 %170, %v165
  %v172 = vpop.permute.xlu0 %171
  %175 = vset.pattern.permute.xlu0 0
  %176 = vperm.xlu0 %175, %v166
  %v177 = vpop.permute.xlu0 %176
  %180 = vset.pattern.permute.xlu0 0
  %181 = vperm.xlu0 %180, %v167
  %v182 = vpop.permute.xlu0 %181
  %185 = vset.pattern.permute.xlu0 0
  %186 = vperm.xlu0 %185, %v168
  %v187 = vpop.permute.xlu0 %186
  %vm189 = vcmask 244736
  %v191 = vsel %vm189, %v161, 0
  %v194 = vsel %vm189, %v162, 0
  %v197 = vsel %vm189, %v163, 0
  %v200 = vsel %vm189, %v164, 0
  %vm202 = vcmask 1045504
  %v204 = vsel %vm202, %v160, 0
  %206 = vmatprep.subr.mxu0 0.0
  %207 = vmatpush1.msra.mxu0 %v157
  %208 = vmatprep.subr.mxu0 0.0
  %209 = vmatpush1.msra.mxu0 %v158
  %210 = vmatprep.subr.mxu0 0.0
  %211 = vmatpush1.msra.mxu0 %v159
  %212 = vmatprep.subr.mxu0 0.0
  %213 = vmatpush1.msra.mxu0 %v204
  %214 = vmatprep.subr.mxu0 0.0
  %215 = vmatpush1.msra.mxu0 0.0
  %216 = vmatprep.subr.mxu0 0.0
  %217 = vmatpush1.msra.mxu0 0.0
  %218 = vmatprep.subr.mxu0 0.0
  %219 = vmatpush1.msra.mxu0 0.0
  %220 = vmatprep.subr.mxu0 0.0
  %221 = vmatpush1.msra.mxu0 0.0
  %222 = vmatprep.subr.mxu0 0.0
  %223 = vmatpush1.msra.mxu0 0.0
  %224 = vmatprep.subr.mxu0 0.0
  %225 = vmatpush1.msra.mxu0 0.0
  %226 = vmatprep.subr.mxu0 0.0
  %227 = vmatpush1.msra.mxu0 0.0
  %228 = vmatprep.subr.mxu0 0.0
  %229 = vmatpush1.msra.mxu0 0.0
  %230 = vmatprep.subr.mxu0 0.0
  %231 = vmatpush1.msra.mxu0 0.0
  %232 = vmatprep.subr.mxu0 0.0
  %233 = vmatpush1.msra.mxu0 0.0
  %234 = vmatprep.subr.mxu0 0.0
  %235 = vmatpush1.msra.mxu0 0.0
  %236 = vmatprep.subr.mxu0 0.0
  %237 = vmatpush1.msra.mxu0 0.0
  %238 = vmatprep.subr.mxu0 0.0
  %239 = vmatpush1.msra.mxu0 0.0
  %240 = vmatprep.subr.mxu0 0.0
  %241 = vmatpush1.msra.mxu0 0.0
  %242 = vmatprep.subr.mxu0 0.0
  %243 = vmatpush1.msra.mxu0 0.0
  %244 = vmatprep.subr.mxu0 0.0
  %245 = vmatpush1.msra.mxu0 0.0
  %246 = vmatprep.subr.mxu0 0.0
  %247 = vmatpush1.msra.mxu0 0.0
  %248 = vmatprep.subr.mxu0 0.0
  %249 = vmatpush1.msra.mxu0 0.0
  %250 = vmatprep.subr.mxu0 0.0
  %251 = vmatpush1.msra.mxu0 0.0
  %252 = vmatprep.subr.mxu0 0.0
  %253 = vmatpush1.msra.mxu0 0.0
  %254 = vmatprep.subr.mxu0 0.0
  %255 = vmatpush1.msra.mxu0 0.0
  %256 = vmatprep.subr.mxu0 0.0
  %257 = vmatpush1.msra.mxu0 0.0
  %258 = vmatprep.subr.mxu0 0.0
  %259 = vmatpush1.msra.mxu0 0.0
  %260 = vmatprep.subr.mxu0 0.0
  %261 = vmatpush1.msra.mxu0 0.0
  %262 = vmatprep.subr.mxu0 0.0
  %263 = vmatpush1.msra.mxu0 0.0
  %264 = vmatprep.subr.mxu0 0.0
  %265 = vmatpush1.msra.mxu0 0.0
  %266 = vmatprep.subr.mxu0 0.0
  %267 = vmatpush1.msra.mxu0 0.0
  %268 = vmatprep.subr.mxu0 0.0
  %269 = vmatpush1.msra.mxu0 0.0
  %270 = vmatprep.mubr.f32.mxu0 0.0
  %271 = vmatmul.mubr.f32.gmra.mrb[0].mxu0 %v191
  %v272 = vpop.f32.mrb[0].mxu0
  %v273 = vadd.f32 %v172, %v272
  %v274 = vpop.f32.mrb[0].mxu0
  %275 = vmatprep.mubr.f32.mxu0 0.0
  %276 = vmatmul.mubr.f32.gmra.mrb[0].mxu0 %v194
  %v277 = vpop.f32.mrb[0].mxu0
  %v278 = vadd.f32 %v177, %v277
  %v279 = vpop.f32.mrb[0].mxu0
  %280 = vmatprep.mubr.f32.mxu0 0.0
  %281 = vmatmul.mubr.f32.gmra.mrb[0].mxu0 %v197
  %v282 = vpop.f32.mrb[0].mxu0
  %v283 = vadd.f32 %v182, %v282
  %v284 = vpop.f32.mrb[0].mxu0
  %285 = vmatprep.mubr.f32.mxu0 0.0
  %286 = vmatmul.mubr.f32.gmra.mrb[0].mxu0 %v200
  %v287 = vpop.f32.mrb[0].mxu0
  %v288 = vadd.f32 %v187, %v287
  %v289 = vpop.f32.mrb[0].mxu0
  %290 = vdwg.mxu0
  %v291 = vmax.f32 %v273, 0.0
  %v292 = vmax.f32 %v278, 0.0
  %v293 = vmax.f32 %v283, 0.0
  %v294 = vmax.f32 %v288, 0.0
  %v295 = vld [vmem:[%s5] sm:$0x7]
  %v296 = vld [vmem:[%s6] sm:$0x7]
  %298 = vset.pattern.permute.xlu0 0
  %299 = vperm.xlu0 %298, %v296
  %v300 = vpop.permute.xlu0 %299
  %v303 = vsel %vm189, %v295, 0
  %v306 = vsel %vm202, %v294, 0
  %308 = vmatprep.subr.mxu0 0.0
  %309 = vmatpush1.msra.mxu0 %v291
  %310 = vmatprep.subr.mxu0 0.0
  %311 = vmatpush1.msra.mxu0 %v292
  %312 = vmatprep.subr.mxu0 0.0
  %313 = vmatpush1.msra.mxu0 %v293
  %314 = vmatprep.subr.mxu0 0.0
  %315 = vmatpush1.msra.mxu0 %v306
  %316 = vmatprep.subr.mxu0 0.0
  %317 = vmatpush1.msra.mxu0 0.0
  %318 = vmatprep.subr.mxu0 0.0
  %319 = vmatpush1.msra.mxu0 0.0
  %320 = vmatprep.subr.mxu0 0.0
  %321 = vmatpush1.msra.mxu0 0.0
  %322 = vmatprep.subr.mxu0 0.0
  %323 = vmatpush1.msra.mxu0 0.0
  %324 = vmatprep.subr.mxu0 0.0
  %325 = vmatpush1.msra.mxu0 0.0
  %326 = vmatprep.subr.mxu0 0.0
  %327 = vmatpush1.msra.mxu0 0.0
  %328 = vmatprep.subr.mxu0 0.0
  %329 = vmatpush1.msra.mxu0 0.0
  %330 = vmatprep.subr.mxu0 0.0
  %331 = vmatpush1.msra.mxu0 0.0
  %332 = vmatprep.subr.mxu0 0.0
  %333 = vmatpush1.msra.mxu0 0.0
  %334 = vmatprep.subr.mxu0 0.0
  %335 = vmatpush1.msra.mxu0 0.0
  %336 = vmatprep.subr.mxu0 0.0
  %337 = vmatpush1.msra.mxu0 0.0
  %338 = vmatprep.subr.mxu0 0.0
  %339 = vmatpush1.msra.mxu0 0.0
  %340 = vmatprep.subr.mxu0 0.0
  %341 = vmatpush1.msra.mxu0 0.0
  %342 = vmatprep.subr.mxu0 0.0
  %343 = vmatpush1.msra.mxu0 0.0
  %344 = vmatprep.subr.mxu0 0.0
  %345 = vmatpush1.msra.mxu0 0.0
  %346 = vmatprep.subr.mxu0 0.0
  %347 = vmatpush1.msra.mxu0 0.0
  %348 = vmatprep.subr.mxu0 0.0
  %349 = vmatpush1.msra.mxu0 0.0
  %350 = vmatprep.subr.mxu0 0.0
  %351 = vmatpush1.msra.mxu0 0.0
  %352 = vmatprep.subr.mxu0 0.0
  %353 = vmatpush1.msra.mxu0 0.0
  %354 = vmatprep.subr.mxu0 0.0
  %355 = vmatpush1.msra.mxu0 0.0
  %356 = vmatprep.subr.mxu0 0.0
  %357 = vmatpush1.msra.mxu0 0.0
  %358 = vmatprep.subr.mxu0 0.0
  %359 = vmatpush1.msra.mxu0 0.0
  %360 = vmatprep.subr.mxu0 0.0
  %361 = vmatpush1.msra.mxu0 0.0
  %362 = vmatprep.subr.mxu0 0.0
  %363 = vmatpush1.msra.mxu0 0.0
  %364 = vmatprep.subr.mxu0 0.0
  %365 = vmatpush1.msra.mxu0 0.0
  %366 = vmatprep.subr.mxu0 0.0
  %367 = vmatpush1.msra.mxu0 0.0
  %368 = vmatprep.subr.mxu0 0.0
  %369 = vmatpush1.msra.mxu0 0.0
  %370 = vmatprep.subr.mxu0 0.0
  %371 = vmatpush1.msra.mxu0 0.0
  %372 = vmatprep.mubr.f32.mxu0 0.0
  %373 = vmatmul.mubr.f32.gmra.mrb[0].mxu0 %v303
  %v374 = vpop.f32.mrb[0].mxu0
  %v375 = vadd.f32 %v300, %v374
  %v376 = vpop.f32.mrb[0].mxu0
  %377 = vdwg.mxu0
  %378 = vst [vmem:[%s7] sm:$0x7] %v375
  // Predicated region
  $region30: #{net2_forward.1} parent=0 // pred_check
    _
  $region31: #{net2_forward.1} parent=0 // pred_check_branch
    %380 = sbr.rel (0) target = $region33
  $region32: #{net2_forward.1} parent=0 // pred_region
    _
  $region33: #{net2_forward.1} parent=0 // pred_fallthru
    _
  // Predicated region
  $region34: #{net2_forward.1} parent=0 // pred_check
    _
  $region35: #{net2_forward.1} parent=0 // pred_check_branch
    %382 = sbr.rel (0) target = $region37
  $region36: #{net2_forward.1} parent=0 // pred_region
    _
  $region37: #{net2_forward.1} parent=0 // pred_fallthru
    _

</llo_original>
